<compile_context>
chip_gen: v5e
topology: v5e:2x2
jax: 0.10.0
libtpu: 0.0.40
codegen_flags: <defaults>
</compile_context>

<pallas_src>
import functools

import numpy as np

import jax
import jax.numpy as jnp
from jax.experimental import pallas as pl
from jax.experimental.pallas import tpu as pltpu


# ------------------------------ Pallas kernel ------------------------------

def _fuse_block_sum_kernel(xl_ref, xh_ref, mt_ref, wcat_ref, bsum_ref, o_ref):
    """Fused FuseBlockSum: upsample-first + single merged 1x1 conv.

    xl_ref   : (B, Cin, Pc)   x_l, spatial flattened onto lanes (chunk of H*W)
    xh_ref   : (B, Cin, Ph)   x_h, spatial flattened (Ph = Hh*Wh), grid-invariant
    mt_ref   : (Ph, Pc)       bilinear matrix (align_corners=False), bf16 (exact for 2x)
    wcat_ref : (Cout, 2*Cin)  [w1 | w2] with eval-mode BN folded in, bf16
    bsum_ref : (Cout, 1)      b1 + b2 (f32)
    o_ref    : (B, Cout, Pc)  f32 output
    """
    mt = mt_ref[...]
    wcat = wcat_ref[...]
    bsum = bsum_ref[...]
    B = o_ref.shape[0]
    for b in range(B):  # tiny static unroll; all heavy work is MXU matmuls
        # Upsample x_h[b] first (conv & bilinear resize commute): one MXU matmul.
        xh_b = xh_ref[b].astype(jnp.bfloat16)                          # (Cin, Ph)
        up_b = jnp.dot(xh_b, mt, preferred_element_type=jnp.float32)   # (Cin, Pc)
        # Merged 1x1 conv (fuse1 + fuse2) as ONE K=2*Cin matmul on the concatenated
        # channels; the residual sum is implicit in the concat+matmul.
        cat_b = jnp.concatenate(
            [xl_ref[b].astype(jnp.bfloat16), up_b.astype(jnp.bfloat16)], axis=0)
        out_b = jnp.dot(wcat, cat_b, preferred_element_type=jnp.float32)  # (Cout, Pc)
        o_ref[b] = (out_b + bsum).astype(o_ref.dtype)


# --------------- bilinear (align_corners=False), host-side numpy ---------------

def _bilinear_taps_np(out_size, in_size):
    """Source indices / weights matching torch F.interpolate(bilinear, align_corners=False)."""
    scale = in_size / out_size
    src = np.maximum(scale * (np.arange(out_size, dtype=np.float64) + 0.5) - 0.5, 0.0)
    i0 = np.clip(np.floor(src).astype(np.int64), 0, in_size - 1)
    i1 = np.minimum(i0 + 1, in_size - 1)
    w1 = (src - i0).astype(np.float32)
    w0 = (1.0 - w1).astype(np.float32)
    return i0, i1, w0, w1


def _bilinear_matrix_1d_np(out_size, in_size):
    """(out, in) matrix M with out = M @ in (1-D bilinear resize)."""
    i0, i1, w0, w1 = _bilinear_taps_np(out_size, in_size)
    m = np.zeros((out_size, in_size), np.float32)
    rows = np.arange(out_size)
    np.add.at(m, (rows, i0), w0)
    np.add.at(m, (rows, i1), w1)
    return m


@functools.lru_cache(maxsize=None)
def _bilinear_matrix_2d(H, W, Hh, Wh):
    """(Hh*Wh, H*W) matrix M^T with  flat_out = flat_in @ M^T  (separable 2-D resize)."""
    A = _bilinear_matrix_1d_np(H, Hh)    # (H, Hh)
    Bm = _bilinear_matrix_1d_np(W, Wh)   # (W, Wh)
    # M^T[(y*Wh + x), (i*W + j)] = A[i, y] * Bm[j, x]
    return np.einsum('iy,jx->yxij', A, Bm).reshape(Hh * Wh, H * W)


# ------------------------------ module forward ------------------------------

def _num_lane_chunks(num_lanes):
    """2-way lane split to use both TensorCores on v7x; single grid step on 1-TC chips."""
    try:
        kind = jax.devices()[0].device_kind.lower()
    except Exception:
        return 1
    if "v7" in kind and num_lanes % 256 == 0:
        return 2
    return 1


def fuse_block_sum(x_l, x_h, params):
    """x_l: (B, Cin, H, W), x_h: (B, Cin, Hh, Wh)  ->  (B, Cout, H, W)  (NCHW, like PyTorch)."""
    B, Cin, H, W = x_l.shape
    _, _, Hh, Wh = x_h.shape
    Cout = params['w1'].shape[0]
    P, Ph = H * W, Hh * Wh

    # Host-built bilinear matrix -> compile-time constant (zero per-call XLA work).
    mt = jnp.asarray(_bilinear_matrix_2d(H, W, Hh, Wh), dtype=jnp.bfloat16)   # (Ph, P)

    # Merged conv: out = [w1 | w2] @ [x_l ; upsample(x_h)] + (b1 + b2).
    # (Interp weights sum to 1, so moving b2 after the resize is exact.)
    wcat = jnp.concatenate([params['w1'], params['w2']], axis=1).astype(jnp.bfloat16)
    bsum = (params['b1'] + params['b2']).astype(jnp.float32)                  # (Cout, 1)

    # Free reshapes (no transposes): spatial goes onto the lane axis.
    xl = x_l.reshape(B, Cin, P)
    xh = x_h.reshape(B, Cin, Ph)

    n = _num_lane_chunks(P)    # 1 on v5e/v6e (single TC), 2 on v7x
    Pc = P // n

    def _const_spec(shape):
        # Grid-invariant operand: single-buffered (no dead VMEM / extra DMA).
        return pl.BlockSpec(shape, lambda i, nd=len(shape): (0,) * nd,
                            pipeline_mode=pl.Buffered(1))

    out = pl.pallas_call(
        _fuse_block_sum_kernel,
        grid=(n,),
        in_specs=[
            pl.BlockSpec((B, Cin, Pc), lambda i: (0, 0, i)),   # x_l lane chunk
            _const_spec((B, Cin, Ph)),                         # x_h (grid-invariant)
            pl.BlockSpec((Ph, Pc), lambda i: (0, i)),          # bilinear matrix chunk
            _const_spec((Cout, 2 * Cin)),                      # merged conv weight
            _const_spec((Cout, 1)),                            # merged bias
        ],
        out_specs=pl.BlockSpec((B, Cout, Pc), lambda i: (0, 0, i)),
        out_shape=jax.ShapeDtypeStruct((B, Cout, P), jnp.float32),
        compiler_params=pltpu.CompilerParams(dimension_semantics=("parallel",)),
    )(xl, xh, mt, wcat, bsum)

    return out.reshape(B, Cout, H, W)


# ------------------------------ parameter init ------------------------------

def _fold_bn(key, n, eps=1e-5):
    """Synthetic, deterministic eval-mode BN running stats folded to (scale, bias)."""
    k1, k2, k3, k4 = jax.random.split(key, 4)
    gamma = 1.0 + 0.1 * jax.random.normal(k1, (n,), jnp.float32)
    beta = 0.1 * jax.random.normal(k2, (n,), jnp.float32)
    mean = 0.1 * jax.random.normal(k3, (n,), jnp.float32)
    var = 1.0 + 0.1 * jax.random.uniform(k4, (n,), jnp.float32)
    scale = gamma / jnp.sqrt(var + eps)
    bias = beta - mean * scale
    return scale, bias


def init_fuse_block_sum(key, inp, oup):
    """ConvModule(k=1, BN, act=None) x2, with eval-mode BN folded into conv weight / bias."""
    k1, k2, k3, k4 = jax.random.split(key, 4)
    w1 = 0.2 * jax.random.normal(k1, (oup, inp), jnp.float32)   # torch 1x1 conv weight (O, I)
    s1, b1 = _fold_bn(k2, oup)
    w2 = 0.2 * jax.random.normal(k3, (oup, inp), jnp.float32)
    s2, b2 = _fold_bn(k4, oup)
    return dict(w1=w1 * s1[:, None], b1=b1.reshape(oup, 1),
                w2=w2 * s2[:, None], b2=b2.reshape(oup, 1))


# ------------------------------ pure-JAX reference ------------------------------

def _reference(x_l, x_h, params):
    """f32, conv-then-upsample, gather-based bilinear -- matches the PyTorch module."""
    B, Cin, H, W = x_l.shape
    Hh, Wh = x_h.shape[2:]
    inp = jnp.einsum('oc,bchw->bohw', params['w1'], x_l) + params['b1'].reshape(1, -1, 1, 1)
    ker = jnp.einsum('oc,bchw->bohw', params['w2'], x_h) + params['b2'].reshape(1, -1, 1, 1)
    y0, y1, wy0, wy1 = _bilinear_taps_np(H, Hh)
    x0, x1, wx0, wx1 = _bilinear_taps_np(W, Wh)
    r = (jnp.take(ker, y0, axis=2) * wy0[None, None, :, None]
         + jnp.take(ker, y1, axis=2) * wy1[None, None, :, None])
    feat_h = (jnp.take(r, x0, axis=3) * wx0[None, None, None, :]
              + jnp.take(r, x1, axis=3) * wx1[None, None, None, :])
    return inp + feat_h


# ------------------------------------ main ------------------------------------

if __name__ == "__main__":
    key = jax.random.PRNGKey(0)
    kl, kh, kp = jax.random.split(key, 3)
    B, Cin, Cout = 2, 32, 32
    H, W = 16, 16          # x_l resolution (target of the interpolate)
    Hh, Wh = 8, 8          # x_h resolution (upsampled 2x)

    x_l = jax.random.normal(kl, (B, Cin, H, W), jnp.float32)
    x_h = jax.random.normal(kh, (B, Cin, Hh, Wh), jnp.float32)
    params = init_fuse_block_sum(kp, Cin, Cout)

    fwd = jax.jit(functools.partial(fuse_block_sum, params=params))
    out = fwd(x_l, x_h)
    jax.block_until_ready(out)
    assert out.shape == (B, Cout, H, W) and out.dtype == jnp.float32

    ref = _reference(x_l, x_h, params)
    max_err = float(jnp.max(jnp.abs(out - ref)))
    # bf16 MXU operands with f32 accumulation: ~1e-2-level absolute error vs the pure-f32
    # reference is expected (flagged as acceptable in the perf review); output scale ~O(1).
    assert max_err < 8e-2, f"max_err={max_err}"
    print("KERNEL_OK")
</pallas_src>

<mosaic_0001>
module attributes {stable_mosaic.version = 11 : i64} {
  func.func @_fuse_block_sum_kernel(%arg0: i32, %arg1: memref<2x32x256xf32, #tpu.memory_space<vmem>>, %arg2: memref<2x32x64xf32, #tpu.memory_space<vmem>>, %arg3: memref<64x256xbf16, #tpu.memory_space<vmem>>, %arg4: memref<32x64xbf16, #tpu.memory_space<vmem>>, %arg5: memref<32x1xf32, #tpu.memory_space<vmem>>, %arg6: memref<2x32x256xf32, #tpu.memory_space<vmem>>) attributes {dimension_semantics = [#tpu.dimension_semantics<parallel>], iteration_bounds = array<i64: 1>, scalar_prefetch = 0 : i64, scratch_operands = 0 : i64, tpu.core_type = #tpu.core_type<tc>, window_params = [{transform_indices = @transform_0, window_bounds = array<i64: 2, 32, 256>}, {pipeline_mode = #tpu.pipeline_mode<synchronous>, transform_indices = @transform_1, window_bounds = array<i64: 2, 32, 64>}, {transform_indices = @transform_2, window_bounds = array<i64: 64, 256>}, {pipeline_mode = #tpu.pipeline_mode<synchronous>, transform_indices = @transform_3, window_bounds = array<i64: 32, 64>}, {pipeline_mode = #tpu.pipeline_mode<synchronous>, transform_indices = @transform_4, window_bounds = array<i64: 32, 1>}, {transform_indices = @transform_5, window_bounds = array<i64: 2, 32, 256>}]} {
    %c0 = arith.constant 0 : index
    %c0_0 = arith.constant 0 : index
    %0 = vector.load %arg3[%c0, %c0_0] : memref<64x256xbf16, #tpu.memory_space<vmem>>, vector<64x256xbf16>
    %c0_1 = arith.constant 0 : index
    %c0_2 = arith.constant 0 : index
    %1 = vector.load %arg4[%c0_1, %c0_2] : memref<32x64xbf16, #tpu.memory_space<vmem>>, vector<32x64xbf16>
    %c0_3 = arith.constant 0 : index
    %c0_4 = arith.constant 0 : index
    %2 = vector.load %arg5[%c0_3, %c0_4] : memref<32x1xf32, #tpu.memory_space<vmem>>, vector<32x1xf32>
    %c0_5 = arith.constant 0 : index
    %c0_6 = arith.constant 0 : index
    %c0_7 = arith.constant 0 : index
    %3 = vector.load %arg2[%c0_5, %c0_6, %c0_7] : memref<2x32x64xf32, #tpu.memory_space<vmem>>, vector<1x32x64xf32>
    %4 = vector.shape_cast %3 : vector<1x32x64xf32> to vector<32x64xf32>
    %5 = arith.truncf %4 : vector<32x64xf32> to vector<32x64xbf16>
    %cst = arith.constant dense<0.000000e+00> : vector<32x256xf32>
    %6 = tpu.matmul %5, %0, %cst {dimension_numbers = #tpu.dot_dimension_numbers<[1], [0], [0], [1], [0, 0, 1, 1], [], []>} : vector<32x64xbf16>, vector<64x256xbf16>, vector<32x256xf32> -> vector<32x256xf32>
    %c0_8 = arith.constant 0 : index
    %c0_9 = arith.constant 0 : index
    %c0_10 = arith.constant 0 : index
    %7 = vector.load %arg1[%c0_8, %c0_9, %c0_10] : memref<2x32x256xf32, #tpu.memory_space<vmem>>, vector<1x32x256xf32>
    %8 = vector.shape_cast %7 : vector<1x32x256xf32> to vector<32x256xf32>
    %9 = arith.truncf %8 : vector<32x256xf32> to vector<32x256xbf16>
    %10 = arith.truncf %6 : vector<32x256xf32> to vector<32x256xbf16>
    %11 = tpu.concatenate %9, %10 in 0 : vector<32x256xbf16>, vector<32x256xbf16> -> vector<64x256xbf16>
    %cst_11 = arith.constant dense<0.000000e+00> : vector<32x256xf32>
    %12 = tpu.matmul %1, %11, %cst_11 {dimension_numbers = #tpu.dot_dimension_numbers<[1], [0], [0], [1], [0, 0, 1, 1], [], []>} : vector<32x64xbf16>, vector<64x256xbf16>, vector<32x256xf32> -> vector<32x256xf32>
    %13 = vector.broadcast %2 : vector<32x1xf32> to vector<32x256xf32>
    %14 = arith.addf %12, %13 : vector<32x256xf32>
    %c0_12 = arith.constant 0 : index
    %c0_13 = arith.constant 0 : index
    %c0_14 = arith.constant 0 : index
    %15 = vector.load %arg6[%c0_12, %c0_13, %c0_14] : memref<2x32x256xf32, #tpu.memory_space<vmem>>, vector<1x32x256xf32>
    %16 = vector.shape_cast %15 : vector<1x32x256xf32> to vector<32x256xf32>
    %17 = vector.shape_cast %14 : vector<32x256xf32> to vector<1x32x256xf32>
    tpu.vector_store %arg6[%c0_12, %c0_13, %c0_14], %17 {strides = array<i32>} : memref<2x32x256xf32, #tpu.memory_space<vmem>>, vector<1x32x256xf32>,
    %c1 = arith.constant 1 : index
    %c0_15 = arith.constant 0 : index
    %c0_16 = arith.constant 0 : index
    %18 = vector.load %arg2[%c1, %c0_15, %c0_16] : memref<2x32x64xf32, #tpu.memory_space<vmem>>, vector<1x32x64xf32>
    %19 = vector.shape_cast %18 : vector<1x32x64xf32> to vector<32x64xf32>
    %20 = arith.truncf %19 : vector<32x64xf32> to vector<32x64xbf16>
    %cst_17 = arith.constant dense<0.000000e+00> : vector<32x256xf32>
    %21 = tpu.matmul %20, %0, %cst_17 {dimension_numbers = #tpu.dot_dimension_numbers<[1], [0], [0], [1], [0, 0, 1, 1], [], []>} : vector<32x64xbf16>, vector<64x256xbf16>, vector<32x256xf32> -> vector<32x256xf32>
    %c1_18 = arith.constant 1 : index
    %c0_19 = arith.constant 0 : index
    %c0_20 = arith.constant 0 : index
    %22 = vector.load %arg1[%c1_18, %c0_19, %c0_20] : memref<2x32x256xf32, #tpu.memory_space<vmem>>, vector<1x32x256xf32>
    %23 = vector.shape_cast %22 : vector<1x32x256xf32> to vector<32x256xf32>
    %24 = arith.truncf %23 : vector<32x256xf32> to vector<32x256xbf16>
    %25 = arith.truncf %21 : vector<32x256xf32> to vector<32x256xbf16>
    %26 = tpu.concatenate %24, %25 in 0 : vector<32x256xbf16>, vector<32x256xbf16> -> vector<64x256xbf16>
    %cst_21 = arith.constant dense<0.000000e+00> : vector<32x256xf32>
    %27 = tpu.matmul %1, %26, %cst_21 {dimension_numbers = #tpu.dot_dimension_numbers<[1], [0], [0], [1], [0, 0, 1, 1], [], []>} : vector<32x64xbf16>, vector<64x256xbf16>, vector<32x256xf32> -> vector<32x256xf32>
    %28 = vector.broadcast %2 : vector<32x1xf32> to vector<32x256xf32>
    %29 = arith.addf %27, %28 : vector<32x256xf32>
    %c1_22 = arith.constant 1 : index
    %c0_23 = arith.constant 0 : index
    %c0_24 = arith.constant 0 : index
    %30 = vector.load %arg6[%c1_22, %c0_23, %c0_24] : memref<2x32x256xf32, #tpu.memory_space<vmem>>, vector<1x32x256xf32>
    %31 = vector.shape_cast %30 : vector<1x32x256xf32> to vector<32x256xf32>
    %32 = vector.shape_cast %29 : vector<32x256xf32> to vector<1x32x256xf32>
    tpu.vector_store %arg6[%c1_22, %c0_23, %c0_24], %32 {strides = array<i32>} : memref<2x32x256xf32, #tpu.memory_space<vmem>>, vector<1x32x256xf32>,
    return
  }
  func.func @transform_0(%arg0: i32) -> (i32, i32, i32) {
    %c0_i32 = arith.constant 0 : i32
    %c0_i32_0 = arith.constant 0 : i32
    %c0_i32_1 = arith.constant 0 : i32
    return %c0_i32, %c0_i32_0, %arg0 : i32, i32, i32
  }
  func.func @transform_1(%arg0: i32) -> (i32, i32, i32) {
    %c0_i32 = arith.constant 0 : i32
    %c0_i32_0 = arith.constant 0 : i32
    %c0_i32_1 = arith.constant 0 : i32
    %c0_i32_2 = arith.constant 0 : i32
    return %c0_i32, %c0_i32_0, %c0_i32_1 : i32, i32, i32
  }
  func.func @transform_2(%arg0: i32) -> (i32, i32) {
    %c0_i32 = arith.constant 0 : i32
    %c0_i32_0 = arith.constant 0 : i32
    return %c0_i32, %arg0 : i32, i32
  }
  func.func @transform_3(%arg0: i32) -> (i32, i32) {
    %c0_i32 = arith.constant 0 : i32
    %c0_i32_0 = arith.constant 0 : i32
    %c0_i32_1 = arith.constant 0 : i32
    return %c0_i32, %c0_i32_0 : i32, i32
  }
  func.func @transform_4(%arg0: i32) -> (i32, i32) {
    %c0_i32 = arith.constant 0 : i32
    %c0_i32_0 = arith.constant 0 : i32
    %c0_i32_1 = arith.constant 0 : i32
    return %c0_i32, %c0_i32_0 : i32, i32
  }
  func.func @transform_5(%arg0: i32) -> (i32, i32, i32) {
    %c0_i32 = arith.constant 0 : i32
    %c0_i32_0 = arith.constant 0 : i32
    %c0_i32_1 = arith.constant 0 : i32
    return %c0_i32, %c0_i32_0, %arg0 : i32, i32, i32
  }
}

</mosaic_0001>

<llo_original>
// kernel: fuse_block_sum.1
$region0: #{fuse_block_sum.1}
  #allocation0 [shape = 'u32[]', space=smem, size = 0x4, offset = 0x4, fixed_abs, tag = 'smem constant byte address 0x4 - core index']
  #allocation1 [shape = 'u32[72,128]{1,0:T(1,128)}', space=vmem, size = 0x9000, scoped, tag = 'internal scratch']
  %s0 = inlined_call_operand.vmem [shape: f32[2,32,256], index: 0, kind: input, shape index: {}]
  %s1 = inlined_call_operand.vmem [shape: f32[2,32,64], index: 1, kind: input, shape index: {}]
  %s2 = inlined_call_operand.vmem [shape: bf16[64,256], index: 2, kind: input, shape index: {}]
  %s3 = inlined_call_operand.vmem [shape: bf16[32,64], index: 3, kind: input, shape index: {}]
  %s4 = inlined_call_operand.vmem [shape: f32[32,1], index: 4, kind: input, shape index: {}]
  %s5 = inlined_call_operand.vmem [shape: f32[2,32,256], index: 5, kind: output, shape index: {}]
  %s6 = sld [smem:[#allocation0]]
  $region30: #{fuse_block_sum.1} parent=0
    _
  %s8 = ssub.s32 1, %s6
  %s9 = scalar_select 0, %s8, %s6
  // Predicated region
  $region2: #{fuse_block_sum.1} parent=0 // pred_check
    _
  $region3: #{fuse_block_sum.1} parent=0 // pred_check_branch
    %11 = sbr.rel (0) target = $region5
  $region4: #{fuse_block_sum.1} parent=0 // pred_region
    _
  $region5: #{fuse_block_sum.1} parent=0 // pred_fallthru
    _
  // Predicated region
  $region6: #{fuse_block_sum.1} parent=0 // pred_check
    _
  $region7: #{fuse_block_sum.1} parent=0 // pred_check_branch
    %13 = sbr.rel (0) target = $region9
  $region8: #{fuse_block_sum.1} parent=0 // pred_region
    _
  $region9: #{fuse_block_sum.1} parent=0 // pred_fallthru
    _
  // Predicated region
  $region10: #{fuse_block_sum.1} parent=0 // pred_check
    _
  $region11: #{fuse_block_sum.1} parent=0 // pred_check_branch
    %15 = sbr.rel (0) target = $region13
  $region12: #{fuse_block_sum.1} parent=0 // pred_region
    _
  $region13: #{fuse_block_sum.1} parent=0 // pred_fallthru
    _
  // Predicated region
  $region14: #{fuse_block_sum.1} parent=0 // pred_check
    _
  $region15: #{fuse_block_sum.1} parent=0 // pred_check_branch
    %17 = sbr.rel (0) target = $region17
  $region16: #{fuse_block_sum.1} parent=0 // pred_region
    _
  $region17: #{fuse_block_sum.1} parent=0 // pred_fallthru
    _
  // Predicated region
  $region18: #{fuse_block_sum.1} parent=0 // pred_check
    _
  $region19: #{fuse_block_sum.1} parent=0 // pred_check_branch
    %19 = sbr.rel (0) target = $region21
  $region20: #{fuse_block_sum.1} parent=0 // pred_region
    _
  $region21: #{fuse_block_sum.1} parent=0 // pred_fallthru
    _
  %v21 = vld [vmem:[%s2] sm:$0xff]
  %v22 = vld [vmem:[%s2 + $0x8] sm:$0xff]
  %v23 = vld [vmem:[%s2 + $0x10] sm:$0xff]
  %v24 = vld [vmem:[%s2 + $0x18] sm:$0xff]
  %v25 = vld [vmem:[%s2 + $0x20] sm:$0xff]
  %v26 = vld [vmem:[%s2 + $0x28] sm:$0xff]
  %v27 = vld [vmem:[%s2 + $0x30] sm:$0xff]
  %v28 = vld [vmem:[%s2 + $0x38] sm:$0xff]
  %v29 = vld [vmem:[%s3] sm:$0xf]
  %v30 = vld [vmem:[%s3 + $0x4] sm:$0xf]
  %v31 = vld [vmem:[%s3 + $0x8] sm:$0xf]
  %v32 = vld [vmem:[%s3 + $0xc] sm:$0xf]
  %v33 = vld [vmem:[%s4] sm:$0xff]
  %v34 = vld [vmem:[%s4 + $0x8] sm:$0xff]
  %v35 = vld [vmem:[%s4 + $0x10] sm:$0xff]
  %v36 = vld [vmem:[%s4 + $0x18] sm:$0xff]
  %v37 = vld [vmem:[%s1] sm:$0xff]
  %v38 = vld [vmem:[%s1 + $0x8] sm:$0xff]
  %v39 = vld [vmem:[%s1 + $0x10] sm:$0xff]
  %v40 = vld [vmem:[%s1 + $0x18] sm:$0xff]
  %v41 = vpack.c.bf16 %v38, %v37
  %v42 = vpack.c.bf16 %v40, %v39
  %v51 = vunpack.c.l.b16 %v21
  %v52 = vunpack.c.h.b16 %v21
  %v53 = vunpack.c.l.b16 %v22
  %v54 = vunpack.c.h.b16 %v22
  %v55 = vunpack.c.l.b16 %v23
  %v56 = vunpack.c.h.b16 %v23
  %v57 = vunpack.c.l.b16 %v24
  %v58 = vunpack.c.h.b16 %v24
  %v59 = vunpack.c.l.b16 %v25
  %v60 = vunpack.c.h.b16 %v25
  %v61 = vunpack.c.l.b16 %v26
  %v62 = vunpack.c.h.b16 %v26
  %v63 = vunpack.c.l.b16 %v27
  %v64 = vunpack.c.h.b16 %v27
  %v65 = vunpack.c.l.b16 %v28
  %v66 = vunpack.c.h.b16 %v28
  %v67 = vpack.c.b16 %v53, %v51
  %v68 = vpack.c.b16 %v54, %v52
  %v69 = vpack.c.b16 %v57, %v55
  %v70 = vpack.c.b16 %v58, %v56
  %v71 = vpack.c.b16 %v61, %v59
  %v72 = vpack.c.b16 %v62, %v60
  %v73 = vpack.c.b16 %v65, %v63
  %v74 = vpack.c.b16 %v66, %v64
  %vm83 = vcmask 523264
  %v85 = vsel %vm83, %v41, 0
  %v88 = vsel %vm83, %v42, 0
  %90 = vmatpush.bf16.msra.mxu0 0
  %91 = vmatpush.bf16.msra.mxu0 0
  %92 = vmatpush.bf16.msra.mxu0 0
  %93 = vmatpush.bf16.msra.mxu0 0
  %94 = vmatpush.bf16.msra.mxu0 %v73
  %95 = vmatpush.bf16.msra.mxu0 %v71
  %96 = vmatpush.bf16.msra.mxu0 %v69
  %97 = vmatpush.bf16.msra.mxu0 %v67
  %98 = vmatmul.bf16.gmra.mxu0 %v85
  %v99 = vpop.f32.mrf.mxu0
  %v100 = vadd.f32 0.0, %v99
  %v101 = vpop.f32.mrf.mxu0
  %v102 = vadd.f32 0.0, %v101
  %103 = vmatmul.bf16.gmra.mxu0 %v88
  %v104 = vpop.f32.mrf.mxu0
  %v105 = vadd.f32 0.0, %v104
  %v106 = vpop.f32.mrf.mxu0
  %v107 = vadd.f32 0.0, %v106
  %108 = vdwg.mxu0
  %109 = vmatpush.bf16.msra.mxu0 0
  %110 = vmatpush.bf16.msra.mxu0 0
  %111 = vmatpush.bf16.msra.mxu0 0
  %112 = vmatpush.bf16.msra.mxu0 0
  %113 = vmatpush.bf16.msra.mxu0 %v74
  %114 = vmatpush.bf16.msra.mxu0 %v72
  %115 = vmatpush.bf16.msra.mxu0 %v70
  %116 = vmatpush.bf16.msra.mxu0 %v68
  %117 = vmatmul.bf16.gmra.mxu0 %v85
  %v118 = vpop.f32.mrf.mxu0
  %v119 = vadd.f32 0.0, %v118
  %v120 = vpop.f32.mrf.mxu0
  %v121 = vadd.f32 0.0, %v120
  %122 = vmatmul.bf16.gmra.mxu0 %v88
  %v123 = vpop.f32.mrf.mxu0
  %v124 = vadd.f32 0.0, %v123
  %v125 = vpop.f32.mrf.mxu0
  %v126 = vadd.f32 0.0, %v125
  %127 = vdwg.mxu0
  %v128 = vld [vmem:[%s0] sm:$0xff]
  %v129 = vld [vmem:[%s0 + $0x8] sm:$0xff]
  %v130 = vld [vmem:[%s0 + $0x10] sm:$0xff]
  %v131 = vld [vmem:[%s0 + $0x18] sm:$0xff]
  %v132 = vld [vmem:[%s0 + $0x20] sm:$0xff]
  %v133 = vld [vmem:[%s0 + $0x28] sm:$0xff]
  %v134 = vld [vmem:[%s0 + $0x30] sm:$0xff]
  %v135 = vld [vmem:[%s0 + $0x38] sm:$0xff]
  %v136 = vpack.c.bf16 %v129, %v128
  %v137 = vpack.c.bf16 %v131, %v130
  %v138 = vpack.c.bf16 %v133, %v132
  %v139 = vpack.c.bf16 %v135, %v134
  %v140 = vpack.c.bf16 %v119, %v100
  %v141 = vpack.c.bf16 %v121, %v102
  %v142 = vpack.c.bf16 %v124, %v105
  %v143 = vpack.c.bf16 %v126, %v107
  %v148 = vunpack.c.l.b16 %v136
  %v149 = vunpack.c.h.b16 %v136
  %v150 = vunpack.c.l.b16 %v137
  %v151 = vunpack.c.h.b16 %v137
  %v152 = vunpack.c.l.b16 %v138
  %v153 = vunpack.c.h.b16 %v138
  %v154 = vunpack.c.l.b16 %v139
  %v155 = vunpack.c.h.b16 %v139
  %v156 = vpack.c.b16 %v150, %v148
  %v157 = vpack.c.b16 %v151, %v149
  %v158 = vpack.c.b16 %v154, %v152
  %v159 = vpack.c.b16 %v155, %v153
  %v168 = vunpack.c.l.b16 %v140
  %v169 = vunpack.c.h.b16 %v140
  %v170 = vunpack.c.l.b16 %v141
  %v171 = vunpack.c.h.b16 %v141
  %v172 = vunpack.c.l.b16 %v142
  %v173 = vunpack.c.h.b16 %v142
  %v174 = vunpack.c.l.b16 %v143
  %v175 = vunpack.c.h.b16 %v143
  %v176 = vpack.c.b16 %v170, %v168
  %v177 = vpack.c.b16 %v171, %v169
  %v178 = vpack.c.b16 %v174, %v172
  %v179 = vpack.c.b16 %v175, %v173
  %185 = vset.pattern.permute.xlu0 0
  %186 = vperm.xlu0 %185, %v33
  %v187 = vpop.permute.xlu0 %186
  %190 = vset.pattern.permute.xlu0 0
  %191 = vperm.xlu0 %190, %v34
  %v192 = vpop.permute.xlu0 %191
  %195 = vset.pattern.permute.xlu0 0
  %196 = vperm.xlu0 %195, %v35
  %v197 = vpop.permute.xlu0 %196
  %200 = vset.pattern.permute.xlu0 0
  %201 = vperm.xlu0 %200, %v36
  %v202 = vpop.permute.xlu0 %201
  %v208 = vunpack.c.l.b16 %v29
  %v209 = vunpack.c.l.b16 %v30
  %v210 = vunpack.c.l.b16 %v31
  %v211 = vunpack.c.l.b16 %v32
  %v212 = vpack.c.b16 %v209, %v208
  %v213 = vpack.c.b16 %v211, %v210
  %v215 = vsel %vm83, %v212, 0
  %v218 = vsel %vm83, %v213, 0
  %220 = vmatpush.bf16.msra.mxu0 0
  %221 = vmatpush.bf16.msra.mxu0 0
  %222 = vmatpush.bf16.msra.mxu0 0
  %223 = vmatpush.bf16.msra.mxu0 0
  %224 = vmatpush.bf16.msra.mxu0 %v178
  %225 = vmatpush.bf16.msra.mxu0 %v176
  %226 = vmatpush.bf16.msra.mxu0 %v158
  %227 = vmatpush.bf16.msra.mxu0 %v156
  %228 = vmatmul.bf16.gmra.mxu0 %v215
  %v229 = vpop.f32.mrf.mxu0
  %v230 = vadd.f32 %v187, %v229
  %v231 = vpop.f32.mrf.mxu0
  %v232 = vadd.f32 %v192, %v231
  %233 = vmatmul.bf16.gmra.mxu0 %v218
  %v234 = vpop.f32.mrf.mxu0
  %v235 = vadd.f32 %v197, %v234
  %v236 = vpop.f32.mrf.mxu0
  %v237 = vadd.f32 %v202, %v236
  %238 = vdwg.mxu0
  %239 = vmatpush.bf16.msra.mxu0 0
  %240 = vmatpush.bf16.msra.mxu0 0
  %241 = vmatpush.bf16.msra.mxu0 0
  %242 = vmatpush.bf16.msra.mxu0 0
  %243 = vmatpush.bf16.msra.mxu0 %v179
  %244 = vmatpush.bf16.msra.mxu0 %v177
  %245 = vmatpush.bf16.msra.mxu0 %v159
  %246 = vmatpush.bf16.msra.mxu0 %v157
  %247 = vmatmul.bf16.gmra.mxu0 %v215
  %v248 = vpop.f32.mrf.mxu0
  %v249 = vadd.f32 %v187, %v248
  %v250 = vpop.f32.mrf.mxu0
  %v251 = vadd.f32 %v192, %v250
  %252 = vmatmul.bf16.gmra.mxu0 %v218
  %v253 = vpop.f32.mrf.mxu0
  %v254 = vadd.f32 %v197, %v253
  %v255 = vpop.f32.mrf.mxu0
  %v256 = vadd.f32 %v202, %v255
  %257 = vdwg.mxu0
  %258 = vst [vmem:[%s5] sm:$0xff] %v230
  %259 = vst [vmem:[%s5 + $0x8] sm:$0xff] %v249
  %260 = vst [vmem:[%s5 + $0x10] sm:$0xff] %v232
  %261 = vst [vmem:[%s5 + $0x18] sm:$0xff] %v251
  %262 = vst [vmem:[%s5 + $0x20] sm:$0xff] %v235
  %263 = vst [vmem:[%s5 + $0x28] sm:$0xff] %v254
  %264 = vst [vmem:[%s5 + $0x30] sm:$0xff] %v237
  %265 = vst [vmem:[%s5 + $0x38] sm:$0xff] %v256
  %s266 = scalar_lea.vmem %s1, 32
  %v267 = vld [vmem:[%s266] sm:$0xff]
  %v268 = vld [vmem:[%s266 + $0x8] sm:$0xff]
  %v269 = vld [vmem:[%s266 + $0x10] sm:$0xff]
  %v270 = vld [vmem:[%s266 + $0x18] sm:$0xff]
  %v271 = vpack.c.bf16 %v268, %v267
  %v272 = vpack.c.bf16 %v270, %v269
  %v274 = vsel %vm83, %v271, 0
  %v277 = vsel %vm83, %v272, 0
  %279 = vmatpush.bf16.msra.mxu0 0
  %280 = vmatpush.bf16.msra.mxu0 0
  %281 = vmatpush.bf16.msra.mxu0 0
  %282 = vmatpush.bf16.msra.mxu0 0
  %283 = vmatpush.bf16.msra.mxu0 %v73
  %284 = vmatpush.bf16.msra.mxu0 %v71
  %285 = vmatpush.bf16.msra.mxu0 %v69
  %286 = vmatpush.bf16.msra.mxu0 %v67
  %287 = vmatmul.bf16.gmra.mxu0 %v274
  %v288 = vpop.f32.mrf.mxu0
  %v289 = vadd.f32 0.0, %v288
  %v290 = vpop.f32.mrf.mxu0
  %v291 = vadd.f32 0.0, %v290
  %292 = vmatmul.bf16.gmra.mxu0 %v277
  %v293 = vpop.f32.mrf.mxu0
  %v294 = vadd.f32 0.0, %v293
  %v295 = vpop.f32.mrf.mxu0
  %v296 = vadd.f32 0.0, %v295
  %297 = vdwg.mxu0
  %298 = vmatpush.bf16.msra.mxu0 0
  %299 = vmatpush.bf16.msra.mxu0 0
  %300 = vmatpush.bf16.msra.mxu0 0
  %301 = vmatpush.bf16.msra.mxu0 0
  %302 = vmatpush.bf16.msra.mxu0 %v74
  %303 = vmatpush.bf16.msra.mxu0 %v72
  %304 = vmatpush.bf16.msra.mxu0 %v70
  %305 = vmatpush.bf16.msra.mxu0 %v68
  %306 = vmatmul.bf16.gmra.mxu0 %v274
  %v307 = vpop.f32.mrf.mxu0
  %v308 = vadd.f32 0.0, %v307
  %v309 = vpop.f32.mrf.mxu0
  %v310 = vadd.f32 0.0, %v309
  %311 = vmatmul.bf16.gmra.mxu0 %v277
  %v312 = vpop.f32.mrf.mxu0
  %v313 = vadd.f32 0.0, %v312
  %v314 = vpop.f32.mrf.mxu0
  %v315 = vadd.f32 0.0, %v314
  %316 = vdwg.mxu0
  %s317 = scalar_lea.vmem %s0, 64
  %v318 = vld [vmem:[%s317] sm:$0xff]
  %v319 = vld [vmem:[%s317 + $0x8] sm:$0xff]
  %v320 = vld [vmem:[%s317 + $0x10] sm:$0xff]
  %v321 = vld [vmem:[%s317 + $0x18] sm:$0xff]
  %v322 = vld [vmem:[%s317 + $0x20] sm:$0xff]
  %v323 = vld [vmem:[%s317 + $0x28] sm:$0xff]
  %v324 = vld [vmem:[%s317 + $0x30] sm:$0xff]
  %v325 = vld [vmem:[%s317 + $0x38] sm:$0xff]
  %v326 = vpack.c.bf16 %v319, %v318
  %v327 = vpack.c.bf16 %v321, %v320
  %v328 = vpack.c.bf16 %v323, %v322
  %v329 = vpack.c.bf16 %v325, %v324
  %v330 = vpack.c.bf16 %v308, %v289
  %v331 = vpack.c.bf16 %v310, %v291
  %v332 = vpack.c.bf16 %v313, %v294
  %v333 = vpack.c.bf16 %v315, %v296
  %v338 = vunpack.c.l.b16 %v326
  %v339 = vunpack.c.h.b16 %v326
  %v340 = vunpack.c.l.b16 %v327
  %v341 = vunpack.c.h.b16 %v327
  %v342 = vunpack.c.l.b16 %v328
  %v343 = vunpack.c.h.b16 %v328
  %v344 = vunpack.c.l.b16 %v329
  %v345 = vunpack.c.h.b16 %v329
  %v346 = vpack.c.b16 %v340, %v338
  %v347 = vpack.c.b16 %v341, %v339
  %v348 = vpack.c.b16 %v344, %v342
  %v349 = vpack.c.b16 %v345, %v343
  %v358 = vunpack.c.l.b16 %v330
  %v359 = vunpack.c.h.b16 %v330
  %v360 = vunpack.c.l.b16 %v331
  %v361 = vunpack.c.h.b16 %v331
  %v362 = vunpack.c.l.b16 %v332
  %v363 = vunpack.c.h.b16 %v332
  %v364 = vunpack.c.l.b16 %v333
  %v365 = vunpack.c.h.b16 %v333
  %v366 = vpack.c.b16 %v360, %v358
  %v367 = vpack.c.b16 %v361, %v359
  %v368 = vpack.c.b16 %v364, %v362
  %v369 = vpack.c.b16 %v365, %v363
  %374 = vmatpush.bf16.msra.mxu0 0
  %375 = vmatpush.bf16.msra.mxu0 0
  %376 = vmatpush.bf16.msra.mxu0 0
  %377 = vmatpush.bf16.msra.mxu0 0
  %378 = vmatpush.bf16.msra.mxu0 %v368
  %379 = vmatpush.bf16.msra.mxu0 %v366
  %380 = vmatpush.bf16.msra.mxu0 %v348
  %381 = vmatpush.bf16.msra.mxu0 %v346
  %382 = vmatmul.bf16.gmra.mxu0 %v215
  %v383 = vpop.f32.mrf.mxu0
  %v384 = vadd.f32 %v187, %v383
  %v385 = vpop.f32.mrf.mxu0
  %v386 = vadd.f32 %v192, %v385
  %387 = vmatmul.bf16.gmra.mxu0 %v218
  %v388 = vpop.f32.mrf.mxu0
  %v389 = vadd.f32 %v197, %v388
  %v390 = vpop.f32.mrf.mxu0
  %v391 = vadd.f32 %v202, %v390
  %392 = vdwg.mxu0
  %393 = vmatpush.bf16.msra.mxu0 0
  %394 = vmatpush.bf16.msra.mxu0 0
  %395 = vmatpush.bf16.msra.mxu0 0
  %396 = vmatpush.bf16.msra.mxu0 0
  %397 = vmatpush.bf16.msra.mxu0 %v369
  %398 = vmatpush.bf16.msra.mxu0 %v367
  %399 = vmatpush.bf16.msra.mxu0 %v349
  %400 = vmatpush.bf16.msra.mxu0 %v347
  %401 = vmatmul.bf16.gmra.mxu0 %v215
  %v402 = vpop.f32.mrf.mxu0
  %v403 = vadd.f32 %v187, %v402
  %v404 = vpop.f32.mrf.mxu0
  %v405 = vadd.f32 %v192, %v404
  %406 = vmatmul.bf16.gmra.mxu0 %v218
  %v407 = vpop.f32.mrf.mxu0
  %v408 = vadd.f32 %v197, %v407
  %v409 = vpop.f32.mrf.mxu0
  %v410 = vadd.f32 %v202, %v409
  %411 = vdwg.mxu0
  %s412 = scalar_lea.vmem %s5, 64
  %413 = vst [vmem:[%s412] sm:$0xff] %v384
  %414 = vst [vmem:[%s412 + $0x8] sm:$0xff] %v403
  %415 = vst [vmem:[%s412 + $0x10] sm:$0xff] %v386
  %416 = vst [vmem:[%s412 + $0x18] sm:$0xff] %v405
  %417 = vst [vmem:[%s412 + $0x20] sm:$0xff] %v389
  %418 = vst [vmem:[%s412 + $0x28] sm:$0xff] %v408
  %419 = vst [vmem:[%s412 + $0x30] sm:$0xff] %v391
  %420 = vst [vmem:[%s412 + $0x38] sm:$0xff] %v410
  // Predicated region
  $region22: #{fuse_block_sum.1} parent=0 // pred_check
    _
  $region23: #{fuse_block_sum.1} parent=0 // pred_check_branch
    %422 = sbr.rel (0) target = $region25
  $region24: #{fuse_block_sum.1} parent=0 // pred_region
    _
  $region25: #{fuse_block_sum.1} parent=0 // pred_fallthru
    _
  // Predicated region
  $region26: #{fuse_block_sum.1} parent=0 // pred_check
    _
  $region27: #{fuse_block_sum.1} parent=0 // pred_check_branch
    %424 = sbr.rel (0) target = $region29
  $region28: #{fuse_block_sum.1} parent=0 // pred_region
    _
  $region29: #{fuse_block_sum.1} parent=0 // pred_fallthru
    _

</llo_original>
